<compile_context>
chip_gen: v7x
topology: tpu7x:2x2x1
jax: 0.10.0
libtpu: 0.0.40
codegen_flags: <defaults>
</compile_context>

<pallas_src>
import functools

import jax
import jax.numpy as jnp
from jax.experimental import pallas as pl
from jax.experimental.pallas import tpu as pltpu


# ----------------------------------------------------------------------------
# Conv1d(k=4, stride=2, pad=1) + LeakyReLU(0.2)
# Pair-reshaped matmul formulation, several batch elements per grid step.
# ----------------------------------------------------------------------------
def _conv_kernel(xa_ref, xb_ref, wa_ref, wb_ref, b_ref, o_ref, *, negative_slope):
    # xa/xb: [bb, Lout, 2*Cin]   (taps 0,1 and taps 2,3 of each window)
    y = jnp.einsum('blc,co->blo', xa_ref[...], wa_ref[...],
                   preferred_element_type=jnp.float32)
    y = y + jnp.einsum('blc,co->blo', xb_ref[...], wb_ref[...],
                       preferred_element_type=jnp.float32)
    y = y + b_ref[...]
    y = jnp.where(y >= 0, y, negative_slope * y)
    o_ref[...] = y.astype(o_ref.dtype)


def conv1d_leaky(x, w, b, block_b=8):
    """x: [B, L, Cin] channels-last, w: [Cout, Cin, K=4] (PyTorch layout)."""
    # TODO(synk): conv1+conv2 could be fused into one pallas_call with the
    # intermediate kept in VMEM; left as two calls (they are far off the
    # critical path vs. the gates matmuls and the serial GRU).
    B, L, Cin = x.shape
    Cout, _, K = w.shape
    Lout = (L + 2 - K) // 2 + 1
    xp = jnp.pad(x, ((0, 0), (1, 1), (0, 0)))                        # [B, L+2, Cin]
    # Two pair-reshaped views (taps 0,1 and taps 2,3); both tile-aligned in the
    # kernel, so no unaligned sublane slices / rolls are needed in-kernel.
    xa = xp[:, 0:2 * Lout, :].reshape(B, Lout, 2 * Cin).astype(jnp.bfloat16)
    xb = xp[:, 2:2 * Lout + 2, :].reshape(B, Lout, 2 * Cin).astype(jnp.bfloat16)

    wt = jnp.transpose(w, (2, 1, 0))                                 # [K, Cin, Cout]
    wa = wt[0:2].reshape(2 * Cin, Cout).astype(jnp.bfloat16)         # taps 0,1
    wb = wt[2:4].reshape(2 * Cin, Cout).astype(jnp.bfloat16)         # taps 2,3
    b2 = b.reshape(1, Cout).astype(jnp.float32)

    bb = min(B, block_b)
    kern = functools.partial(_conv_kernel, negative_slope=0.2)
    return pl.pallas_call(
        kern,
        grid=(pl.cdiv(B, bb),),
        in_specs=[pl.BlockSpec((bb, Lout, 2 * Cin), lambda i: (i, 0, 0)),
                  pl.BlockSpec((bb, Lout, 2 * Cin), lambda i: (i, 0, 0)),
                  pl.BlockSpec((2 * Cin, Cout), lambda i: (0, 0)),
                  pl.BlockSpec((2 * Cin, Cout), lambda i: (0, 0)),
                  pl.BlockSpec((1, Cout), lambda i: (0, 0))],
        out_specs=pl.BlockSpec((bb, Lout, Cout), lambda i: (i, 0, 0)),
        out_shape=jax.ShapeDtypeStruct((B, Lout, Cout), jnp.bfloat16),
        compiler_params=pltpu.CompilerParams(dimension_semantics=("parallel",)),
    )(xa, xb, wa, wb, b2)


# ----------------------------------------------------------------------------
# Fused mov_out Linear -> input_emb Linear -> GRU input-gate projection of BOTH
# directions.  Output is direction-major [2, M, 3H] in bf16 (M = T4p*B rows,
# time-major) so the GRU needs no further layout change.
# ----------------------------------------------------------------------------
def _gates_kernel(x_ref, wm_ref, bm_ref, we_ref, be_ref,
                  wgf_ref, bgf_ref, wgb_ref, bgb_ref, o_ref):
    h = jnp.dot(x_ref[...], wm_ref[...], preferred_element_type=jnp.float32)
    h = h + bm_ref[...]
    h = jnp.dot(h.astype(jnp.bfloat16), we_ref[...],
                preferred_element_type=jnp.float32) + be_ref[...]
    hb = h.astype(jnp.bfloat16)
    yf = jnp.dot(hb, wgf_ref[...], preferred_element_type=jnp.float32) + bgf_ref[...]
    yb = jnp.dot(hb, wgb_ref[...], preferred_element_type=jnp.float32) + bgb_ref[...]
    o_ref[0] = yf.astype(o_ref.dtype)            # forward-direction gate rows
    o_ref[1] = yb.astype(o_ref.dtype)            # backward-direction gate rows


def pallas_gates(x, wm, bm, we, be, wg_f, bg_f, wg_b, bg_b, block_m=256):
    """x: [M, L1] (time-major rows).  Returns bf16 [2, M, 3H]."""
    M, L1 = x.shape
    Hm = we.shape[1]
    H3 = wg_f.shape[1]
    tm = min(M, block_m)                          # 256 keeps v7x (64 MiB) happy
    return pl.pallas_call(
        _gates_kernel,
        grid=(pl.cdiv(M, tm),),
        in_specs=[pl.BlockSpec((tm, L1), lambda i: (i, 0)),
                  pl.BlockSpec((L1, L1), lambda i: (0, 0)),
                  pl.BlockSpec((1, L1), lambda i: (0, 0)),
                  pl.BlockSpec((L1, Hm), lambda i: (0, 0)),
                  pl.BlockSpec((1, Hm), lambda i: (0, 0)),
                  pl.BlockSpec((Hm, H3), lambda i: (0, 0)),
                  pl.BlockSpec((1, H3), lambda i: (0, 0)),
                  pl.BlockSpec((Hm, H3), lambda i: (0, 0)),
                  pl.BlockSpec((1, H3), lambda i: (0, 0))],
        out_specs=pl.BlockSpec((2, tm, H3), lambda i: (0, i, 0)),
        out_shape=jax.ShapeDtypeStruct((2, M, H3), jnp.bfloat16),
        compiler_params=pltpu.CompilerParams(
            dimension_semantics=("parallel",),
            vmem_limit_bytes=64 * 1024 * 1024),
    )(x.astype(jnp.bfloat16),
      wm.astype(jnp.bfloat16), bm.reshape(1, -1).astype(jnp.float32),
      we.astype(jnp.bfloat16), be.reshape(1, -1).astype(jnp.float32),
      wg_f.astype(jnp.bfloat16), bg_f.reshape(1, -1).astype(jnp.float32),
      wg_b.astype(jnp.bfloat16), bg_b.reshape(1, -1).astype(jnp.float32))


# ----------------------------------------------------------------------------
# Bidirectional GRU: grid = (2 directions ["parallel"], time chunks
# ["arbitrary"]).  The hidden-state carry lives in the (direction-resident)
# output block; only a [tchunk, B, 3H] bf16 gate chunk streams per grid step.
# ----------------------------------------------------------------------------
def _bigru_kernel(xg_ref, whh_ref, bhh_ref, h0_ref, lens_ref, hout_ref, *,
                  tchunk, n_chunks, H):
    d = pl.program_id(0)                       # 0 = forward, 1 = backward
    c = pl.program_id(1)                       # time-chunk grid step

    @pl.when(c == 0)
    def _():
        hout_ref[...] = h0_ref[...]            # init hidden carry

    whh = whh_ref[...]                         # [H, 3H] bf16, chunk-invariant
    bhh = bhh_ref[...]                         # [1, 3H] f32
    lens = lens_ref[...]                       # [B, 1] int32
    chunk = c + d * (n_chunks - 1 - 2 * c)     # fwd: c,      bwd: n_chunks-1-c
    base = chunk * tchunk

    def step(s, h):
        s_loc = s + d * (tchunk - 1 - 2 * s)   # fwd: s,      bwd: tchunk-1-s
        t_glob = base + s_loc
        xg = xg_ref[s_loc].astype(jnp.float32)                     # [B, 3H]
        hg = jnp.dot(h.astype(jnp.bfloat16), whh,
                     preferred_element_type=jnp.float32) + bhh
        # one EUP push over the concatenated r|z slab
        rz = jax.nn.sigmoid(xg[:, :2 * H] + hg[:, :2 * H])
        r, z = rz[:, :H], rz[:, H:]
        # TODO(synk): on v6e/v7x the sigmoid/tanh could run in bf16 on the EUP.
        n = jnp.tanh(xg[:, 2 * H:] + r * hg[:, 2 * H:])
        h_new = (1.0 - z) * n + z * h
        # packed-sequence emulation: hidden only updates on valid timesteps
        return jnp.where(t_glob < lens, h_new, h)

    hout_ref[...] = jax.lax.fori_loop(0, tchunk, step, hout_ref[...],
                                      unroll=min(4, tchunk))


def pallas_bigru(xg, w_hh, b_hh, h0, lens, *, tchunk):
    """xg: [2, T4p, B, 3H] bf16 (T4p = n_chunks*tchunk), w_hh: [2, H, 3H],
    b_hh: [2, 1, 3H], h0: [2, B, H], lens: [B, 1] int32 -> [2, B, H] f32."""
    _, T4p, B, H3 = xg.shape
    H = H3 // 3
    n_chunks = T4p // tchunk
    kern = functools.partial(_bigru_kernel, tchunk=tchunk, n_chunks=n_chunks, H=H)
    # TODO(synk): sweep pipeline_mode=pl.Buffered(3) on the xg chunk spec.
    return pl.pallas_call(
        kern,
        grid=(2, n_chunks),
        in_specs=[
            # backward direction walks the time chunks in reverse
            pl.BlockSpec((None, tchunk, B, H3),
                         lambda d, c: (d, c + d * (n_chunks - 1 - 2 * c), 0, 0)),
            pl.BlockSpec((None, H, H3), lambda d, c: (d, 0, 0)),   # resident / dir
            pl.BlockSpec((None, 1, H3), lambda d, c: (d, 0, 0)),
            pl.BlockSpec((None, B, H), lambda d, c: (d, 0, 0)),
            pl.BlockSpec((B, 1), lambda d, c: (0, 0)),
        ],
        out_specs=pl.BlockSpec((None, B, H), lambda d, c: (d, 0, 0)),
        out_shape=jax.ShapeDtypeStruct((2, B, H), jnp.float32),
        compiler_params=pltpu.CompilerParams(
            dimension_semantics=("parallel", "arbitrary"),
            vmem_limit_bytes=64 * 1024 * 1024),
    )(xg, w_hh.astype(jnp.bfloat16), b_hh.astype(jnp.float32),
      h0.astype(jnp.float32), lens)


# ----------------------------------------------------------------------------
# Output net: Linear -> LayerNorm -> LeakyReLU(0.2) -> Linear, fully fused
# ----------------------------------------------------------------------------
def _output_net_kernel(x_ref, w1_ref, b1_ref, g_ref, beta_ref, w2_ref, b2_ref,
                       o_ref):
    h = jnp.dot(x_ref[...], w1_ref[...], preferred_element_type=jnp.float32)
    h = h + b1_ref[...]
    mean = jnp.mean(h, axis=-1, keepdims=True)
    var = jnp.mean(jnp.square(h - mean), axis=-1, keepdims=True)
    h = (h - mean) * jax.lax.rsqrt(var + 1e-5) * g_ref[...] + beta_ref[...]
    h = jnp.where(h >= 0, h, 0.2 * h)
    y = jnp.dot(h.astype(jnp.bfloat16), w2_ref[...],
                preferred_element_type=jnp.float32) + b2_ref[...]
    o_ref[...] = y.astype(o_ref.dtype)


def pallas_output_net(x, w1, b1, gamma, beta, w2, b2):
    B = x.shape[0]
    H = w1.shape[1]
    N = w2.shape[1]
    return pl.pallas_call(
        _output_net_kernel,
        out_shape=jax.ShapeDtypeStruct((B, N), jnp.float32),
    )(x.astype(jnp.bfloat16), w1.astype(jnp.bfloat16),
      b1.reshape(1, H).astype(jnp.float32),
      gamma.reshape(1, H).astype(jnp.float32),
      beta.reshape(1, H).astype(jnp.float32),
      w2.astype(jnp.bfloat16), b2.reshape(1, N).astype(jnp.float32))


# ----------------------------------------------------------------------------
# Parameter init (matches the PyTorch module's structure; weights arranged for
# the fused forward path)
# ----------------------------------------------------------------------------
def init_params(key, input_size, movement_hidden, movement_latent,
                motion_hidden, motion_latent):
    keys = jax.random.split(key, 16)
    Cin = input_size - 4
    Hm = motion_hidden

    def xavier(k, shape, fan_in, fan_out):
        std = (2.0 / (fan_in + fan_out)) ** 0.5
        return std * jax.random.normal(k, shape, dtype=jnp.float32)

    p = {}
    # MovementConvEncoder
    p['conv1_w'] = xavier(keys[0], (movement_hidden, Cin, 4), Cin * 4,
                          movement_hidden * 4)
    p['conv1_b'] = jnp.zeros((movement_hidden,), jnp.float32)
    p['conv2_w'] = xavier(keys[1], (movement_latent, movement_hidden, 4),
                          movement_hidden * 4, movement_latent * 4)
    p['conv2_b'] = jnp.zeros((movement_latent,), jnp.float32)
    p['mov_out_w'] = xavier(keys[2], (movement_latent, movement_latent),
                            movement_latent, movement_latent)
    p['mov_out_b'] = jnp.zeros((movement_latent,), jnp.float32)

    # MotionEncoderBiGRUCo
    p['emb_w'] = xavier(keys[3], (movement_latent, Hm), movement_latent, Hm)
    p['emb_b'] = jnp.zeros((Hm,), jnp.float32)

    bound = 1.0 / (Hm ** 0.5)

    def uni(k, shape):
        return jax.random.uniform(k, shape, jnp.float32, -bound, bound)

    # input->gate weights per direction, gates (r,z,n) fused along lanes
    p['gru_wih'] = uni(keys[4], (2, Hm, 3 * Hm))
    p['gru_bih'] = uni(keys[5], (2, 1, 3 * Hm))
    # recurrent weights per direction, gates (r,z,n) fused along lanes
    p['gru_whh'] = uni(keys[6], (2, Hm, 3 * Hm))
    p['gru_bhh'] = uni(keys[7], (2, 1, 3 * Hm))
    p['gru_h0'] = jax.random.normal(keys[8], (2, 1, Hm), dtype=jnp.float32)

    p['out_w1'] = xavier(keys[9], (2 * Hm, Hm), 2 * Hm, Hm)
    p['out_b1'] = jnp.zeros((Hm,), jnp.float32)
    p['out_gamma'] = jnp.ones((Hm,), jnp.float32)
    p['out_beta'] = jnp.zeros((Hm,), jnp.float32)
    p['out_w2'] = xavier(keys[10], (Hm, motion_latent), Hm, motion_latent)
    p['out_b2'] = jnp.zeros((motion_latent,), jnp.float32)
    return p


# ----------------------------------------------------------------------------
# Full forward
# ----------------------------------------------------------------------------
def t2m_motion_encoder_forward(params, motion, motion_length, motion_mask=None,
                               *, gru_time_chunk=16):
    """motion: [B, T, D] float32, motion_length: [B] int32, motion_mask unused."""
    B, T, D = motion.shape
    motion = motion.astype(jnp.float32)

    # NOTE: the reference sorts by length only to satisfy pack_padded_sequence
    # and unsorts at the end; our GRU kernel enforces validity with per-row
    # length masks, so the sort/unsort gathers are dropped entirely.

    # --- MovementConvEncoder on motion[..., :-4] -----------------------------
    x = motion[..., :D - 4]                                       # [B, T, Cin]
    h = conv1d_leaky(x, params['conv1_w'], params['conv1_b'])     # [B, T//2, H1]
    h = conv1d_leaky(h, params['conv2_w'], params['conv2_b'])     # [B, T//4, L1]
    # TODO(synk): nn.Dropout(0.2) layers are identity here (inference semantics).
    B2, T4, L1 = h.shape
    Hm = params['emb_w'].shape[1]

    # --- time-major layout + pad to a multiple of the GRU time chunk ---------
    # Cheap transform of the SMALL pre-gate activation (replaces the former
    # full-size gate-tensor transpose in HBM).
    tchunk = min(gru_time_chunk, T4)
    T4p = pl.cdiv(T4, tchunk) * tchunk
    h_t = jnp.transpose(h, (1, 0, 2))                             # [T4, B, L1]
    if T4p != T4:
        h_t = jnp.pad(h_t, ((0, T4p - T4), (0, 0), (0, 0)))
    h_flat = h_t.reshape(T4p * B2, L1)

    # --- fused mov_out -> input_emb -> input-gate projections (both dirs) ----
    xg_all = pallas_gates(h_flat,
                          params['mov_out_w'], params['mov_out_b'],
                          params['emb_w'], params['emb_b'],
                          params['gru_wih'][0], params['gru_bih'][0],
                          params['gru_wih'][1], params['gru_bih'][1])
    xg = xg_all.reshape(2, T4p, B2, 3 * Hm)                       # free reshape, bf16

    m_lens = (motion_length // 4).astype(jnp.int32).reshape(B, 1)
    h0 = jnp.broadcast_to(params['gru_h0'], (2, B, Hm)).astype(jnp.float32)

    finals = pallas_bigru(xg, params['gru_whh'], params['gru_bhh'],
                          h0, m_lens, tchunk=tchunk)              # [2, B, Hm]
    gru_last = jnp.concatenate([finals[0], finals[1]], axis=-1)   # [B, 2Hm]

    return pallas_output_net(gru_last,
                             params['out_w1'], params['out_b1'],
                             params['out_gamma'], params['out_beta'],
                             params['out_w2'], params['out_b2'])


# ----------------------------------------------------------------------------
if __name__ == "__main__":
    key = jax.random.PRNGKey(0)
    B, T = 2, 16
    input_size = 12
    movement_hidden, movement_latent = 16, 16
    motion_hidden, motion_latent = 32, 32

    pkey, dkey = jax.random.split(key)
    params = init_params(pkey, input_size, movement_hidden, movement_latent,
                         motion_hidden, motion_latent)

    motion = jax.random.normal(dkey, (B, T, input_size), dtype=jnp.float32)
    motion_length = jnp.array([12, 16], dtype=jnp.int32)
    motion_mask = (jnp.arange(T)[None, :] < motion_length[:, None]).astype(jnp.float32)

    out = t2m_motion_encoder_forward(params, motion, motion_length, motion_mask)
    out = jax.block_until_ready(out)
    assert out.shape == (B, motion_latent)
    assert bool(jnp.all(jnp.isfinite(out)))
    print("KERNEL_OK")
</pallas_src>

<mosaic_0001>
module attributes {stable_mosaic.version = 11 : i64} {
  func.func @_conv_kernel(%arg0: i32, %arg1: memref<2x8x16xbf16, #tpu.memory_space<vmem>>, %arg2: memref<2x8x16xbf16, #tpu.memory_space<vmem>>, %arg3: memref<16x16xbf16, #tpu.memory_space<vmem>>, %arg4: memref<16x16xbf16, #tpu.memory_space<vmem>>, %arg5: memref<1x16xf32, #tpu.memory_space<vmem>>, %arg6: memref<2x8x16xbf16, #tpu.memory_space<vmem>>) attributes {dimension_semantics = [#tpu.dimension_semantics<parallel>], iteration_bounds = array<i64: 1>, scalar_prefetch = 0 : i64, scratch_operands = 0 : i64, tpu.core_type = #tpu.core_type<tc>, window_params = [{transform_indices = @transform_0, window_bounds = array<i64: 2, 8, 16>}, {transform_indices = @transform_1, window_bounds = array<i64: 2, 8, 16>}, {pipeline_mode = #tpu.pipeline_mode<synchronous>, transform_indices = @transform_2, window_bounds = array<i64: 16, 16>}, {pipeline_mode = #tpu.pipeline_mode<synchronous>, transform_indices = @transform_3, window_bounds = array<i64: 16, 16>}, {pipeline_mode = #tpu.pipeline_mode<synchronous>, transform_indices = @transform_4, window_bounds = array<i64: 1, 16>}, {transform_indices = @transform_5, window_bounds = array<i64: 2, 8, 16>}]} {
    %c0 = arith.constant 0 : index
    %c0_0 = arith.constant 0 : index
    %c0_1 = arith.constant 0 : index
    %0 = vector.load %arg1[%c0, %c0_0, %c0_1] : memref<2x8x16xbf16, #tpu.memory_space<vmem>>, vector<2x8x16xbf16>
    %c0_2 = arith.constant 0 : index
    %c0_3 = arith.constant 0 : index
    %1 = vector.load %arg3[%c0_2, %c0_3] : memref<16x16xbf16, #tpu.memory_space<vmem>>, vector<16x16xbf16>
    "tpu.trace_start"() <{level = 10 : i32, message = "blc,co->blo"}> : () -> ()
    %cst = arith.constant dense<0.000000e+00> : vector<2x8x16xf32>
    %2 = tpu.matmul %0, %1, %cst {dimension_numbers = #tpu.dot_dimension_numbers<[2], [0], [0, 1], [1], [0, 0, 0, 1, 1, 1], [], []>} : vector<2x8x16xbf16>, vector<16x16xbf16>, vector<2x8x16xf32> -> vector<2x8x16xf32>
    "tpu.trace_stop"() : () -> ()
    %c0_4 = arith.constant 0 : index
    %c0_5 = arith.constant 0 : index
    %c0_6 = arith.constant 0 : index
    %3 = vector.load %arg2[%c0_4, %c0_5, %c0_6] : memref<2x8x16xbf16, #tpu.memory_space<vmem>>, vector<2x8x16xbf16>
    %c0_7 = arith.constant 0 : index
    %c0_8 = arith.constant 0 : index
    %4 = vector.load %arg4[%c0_7, %c0_8] : memref<16x16xbf16, #tpu.memory_space<vmem>>, vector<16x16xbf16>
    "tpu.trace_start"() <{level = 10 : i32, message = "blc,co->blo"}> : () -> ()
    %cst_9 = arith.constant dense<0.000000e+00> : vector<2x8x16xf32>
    %5 = tpu.matmul %3, %4, %cst_9 {dimension_numbers = #tpu.dot_dimension_numbers<[2], [0], [0, 1], [1], [0, 0, 0, 1, 1, 1], [], []>} : vector<2x8x16xbf16>, vector<16x16xbf16>, vector<2x8x16xf32> -> vector<2x8x16xf32>
    "tpu.trace_stop"() : () -> ()
    %6 = arith.addf %2, %5 : vector<2x8x16xf32>
    %c0_10 = arith.constant 0 : index
    %c0_11 = arith.constant 0 : index
    %7 = vector.load %arg5[%c0_10, %c0_11] : memref<1x16xf32, #tpu.memory_space<vmem>>, vector<1x16xf32>
    %8 = vector.shape_cast %7 : vector<1x16xf32> to vector<1x1x16xf32>
    %9 = vector.broadcast %8 : vector<1x1x16xf32> to vector<2x8x16xf32>
    %10 = arith.addf %6, %9 : vector<2x8x16xf32>
    %cst_12 = arith.constant 0.000000e+00 : f32
    %11 = vector.broadcast %cst_12 : f32 to vector<2x8x16xf32>
    %12 = arith.cmpf oge, %10, %11 : vector<2x8x16xf32>
    %cst_13 = arith.constant 2.000000e-01 : f32
    %13 = vector.broadcast %cst_13 : f32 to vector<2x8x16xf32>
    %14 = arith.mulf %13, %10 : vector<2x8x16xf32>
    %15 = arith.select %12, %10, %14 : vector<2x8x16xi1>, vector<2x8x16xf32>
    %16 = arith.truncf %15 : vector<2x8x16xf32> to vector<2x8x16xbf16>
    %c0_14 = arith.constant 0 : index
    %c0_15 = arith.constant 0 : index
    %c0_16 = arith.constant 0 : index
    %17 = vector.load %arg6[%c0_14, %c0_15, %c0_16] : memref<2x8x16xbf16, #tpu.memory_space<vmem>>, vector<2x8x16xbf16>
    tpu.vector_store %arg6[%c0_14, %c0_15, %c0_16], %16 {strides = array<i32>} : memref<2x8x16xbf16, #tpu.memory_space<vmem>>, vector<2x8x16xbf16>,
    return
  }
  func.func @transform_0(%arg0: i32) -> (i32, i32, i32) {
    %c0_i32 = arith.constant 0 : i32
    %c0_i32_0 = arith.constant 0 : i32
    %c0_i32_1 = arith.constant 0 : i32
    return %arg0, %c0_i32, %c0_i32_0 : i32, i32, i32
  }
  func.func @transform_1(%arg0: i32) -> (i32, i32, i32) {
    %c0_i32 = arith.constant 0 : i32
    %c0_i32_0 = arith.constant 0 : i32
    %c0_i32_1 = arith.constant 0 : i32
    return %arg0, %c0_i32, %c0_i32_0 : i32, i32, i32
  }
  func.func @transform_2(%arg0: i32) -> (i32, i32) {
    %c0_i32 = arith.constant 0 : i32
    %c0_i32_0 = arith.constant 0 : i32
    %c0_i32_1 = arith.constant 0 : i32
    return %c0_i32, %c0_i32_0 : i32, i32
  }
  func.func @transform_3(%arg0: i32) -> (i32, i32) {
    %c0_i32 = arith.constant 0 : i32
    %c0_i32_0 = arith.constant 0 : i32
    %c0_i32_1 = arith.constant 0 : i32
    return %c0_i32, %c0_i32_0 : i32, i32
  }
  func.func @transform_4(%arg0: i32) -> (i32, i32) {
    %c0_i32 = arith.constant 0 : i32
    %c0_i32_0 = arith.constant 0 : i32
    %c0_i32_1 = arith.constant 0 : i32
    return %c0_i32, %c0_i32_0 : i32, i32
  }
  func.func @transform_5(%arg0: i32) -> (i32, i32, i32) {
    %c0_i32 = arith.constant 0 : i32
    %c0_i32_0 = arith.constant 0 : i32
    %c0_i32_1 = arith.constant 0 : i32
    return %arg0, %c0_i32, %c0_i32_0 : i32, i32, i32
  }
}

</mosaic_0001>

<llo_original>
// kernel: tpu_custom_call.1
$region0: #{tpu_custom_call.1}
  #allocation0 [shape = 'u32[]', space=smem, size = 0x4, offset = 0x4, fixed_abs, tag = 'smem constant byte address 0x4 - core index']
  #allocation1 [shape = 'u32[144,128]{1,0:T(1,128)}', space=vmem, size = 0x12000, scoped, tag = 'internal scratch']
  %s0 = inlined_call_operand.hbm [shape: bf16[2,8,16], index: 0, kind: input, shape index: {}]
  %s1 = inlined_call_operand.hbm [shape: bf16[2,8,16], index: 1, kind: input, shape index: {}]
  %s2 = inlined_call_operand.hbm [shape: bf16[16,16], index: 2, kind: input, shape index: {}]
  %s3 = inlined_call_operand.vmem [shape: bf16[16,16], index: 3, kind: input, shape index: {}]
  %s4 = inlined_call_operand.vmem [shape: f32[1,16], index: 4, kind: input, shape index: {}]
  %s5 = inlined_call_operand.hbm [shape: bf16[2,8,16], index: 5, kind: output, shape index: {}]
  %s6 = sld [smem:[#allocation0]]
  $region42: #{tpu_custom_call.1} parent=0
    _
  %s8 = ssub.s32 1, %s6
  %s9 = scalar_select 0, %s8, %s6
  $region1: #{tpu_custom_call.1} parent=0
    #allocation2 [shape = 'u8[4096]{0}', space=vmem, size = 0x1000, scoped, tag = 'input window, operand 0, single buffered']
    #allocation3 [shape = 's32[1]{0}', space=sflag, size = 0x4, scoped, tag = 'scoped memory for tpu_custom_call.1']
    #allocation4 [shape = 's32[1]{0}', space=sflag, size = 0x4, scoped, tag = 'scoped memory for tpu_custom_call.1']
    #allocation5 [shape = 'u8[4096]{0}', space=vmem, size = 0x1000, scoped, tag = 'input window, operand 1, single buffered']
    #allocation6 [shape = 's32[1]{0}', space=sflag, size = 0x4, scoped, tag = 'scoped memory for tpu_custom_call.1']
    #allocation7 [shape = 'u8[4096]{0}', space=vmem, size = 0x1000, scoped, tag = 'input window, operand 2, single buffered']
    #allocation8 [shape = 'u8[4096]{0}', space=vmem, size = 0x1000, scoped, tag = 'output window, operand 0, single buffered']
    %10 = vsyncpa [#allocation3], 0
    %11 = vsyncpa [#allocation6], 0
    %12 = vsyncpa [#allocation4], 0
    // Predicated region
    $region2: #{tpu_custom_call.1} parent=1 // pred_check
      _
    $region3: #{tpu_custom_call.1} parent=1 // pred_check_branch
      %14 = sbr.rel (0) target = $region5
    $region4: #{tpu_custom_call.1} parent=1 // pred_region
      %s16 = ssub.s32 128, 128
      %17 = vsyncadd [#allocation3], %s16
      %s18 = sshll.u32 [#allocation2], 4
      %s19 = int_to_ptr.vmem [resolvable:$true] %s18
      %24 = dma.hbm_to_vmem [thread:$0]  %s0, 128, %s19, [#allocation3], 64, 64, 4
    $region5: #{tpu_custom_call.1} parent=1 // pred_fallthru
      _
    // Predicated region
    $region6: #{tpu_custom_call.1} parent=1 // pred_check
      _
    $region7: #{tpu_custom_call.1} parent=1 // pred_check_branch
      %26 = sbr.rel (0) target = $region9
    $region8: #{tpu_custom_call.1} parent=1 // pred_region
      %s28 = ssub.s32 128, 128
      %29 = vsyncadd [#allocation6], %s28
      %s30 = sshll.u32 [#allocation5], 4
      %s31 = int_to_ptr.vmem [resolvable:$true] %s30
      %36 = dma.hbm_to_vmem [thread:$0]  %s1, 128, %s31, [#allocation6], 64, 64, 4
    $region9: #{tpu_custom_call.1} parent=1 // pred_fallthru
      _
    // Predicated region
    $region10: #{tpu_custom_call.1} parent=1 // pred_check
      _
    $region11: #{tpu_custom_call.1} parent=1 // pred_check_branch
      %38 = sbr.rel (0) target = $region13
    $region12: #{tpu_custom_call.1} parent=1 // pred_region
      %s40 = ssub.s32 128, 128
      %41 = vsyncadd [#allocation6], %s40
      %s42 = sshll.u32 [#allocation7], 4
      %s43 = int_to_ptr.vmem [resolvable:$true] %s42
      %48 = dma.hbm_to_vmem [thread:$0]  %s2, 128, %s43, [#allocation6], 64, 64, 4
    $region13: #{tpu_custom_call.1} parent=1 // pred_fallthru
      _
    // Predicated region
    $region14: #{tpu_custom_call.1} parent=1 // pred_check
      _
    $region15: #{tpu_custom_call.1} parent=1 // pred_check_branch
      %50 = sbr.rel (0) target = $region17
    $region16: #{tpu_custom_call.1} parent=1 // pred_region
      _
    $region17: #{tpu_custom_call.1} parent=1 // pred_fallthru
      _
    // Predicated region
    $region18: #{tpu_custom_call.1} parent=1 // pred_check
      _
    $region19: #{tpu_custom_call.1} parent=1 // pred_check_branch
      %52 = sbr.rel (0) target = $region21
    $region20: #{tpu_custom_call.1} parent=1 // pred_region
      _
    $region21: #{tpu_custom_call.1} parent=1 // pred_fallthru
      _
    // Predicated region
    $region22: #{tpu_custom_call.1} parent=1 // pred_check
      _
    $region23: #{tpu_custom_call.1} parent=1 // pred_check_branch
      %54 = sbr.rel (0) target = $region25
    $region24: #{tpu_custom_call.1} parent=1 // pred_region
      %55 = dma.done [#allocation3], 128
    $region25: #{tpu_custom_call.1} parent=1 // pred_fallthru
      _
    // Predicated region
    $region26: #{tpu_custom_call.1} parent=1 // pred_check
      _
    $region27: #{tpu_custom_call.1} parent=1 // pred_check_branch
      %57 = sbr.rel (0) target = $region29
    $region28: #{tpu_custom_call.1} parent=1 // pred_region
      %58 = dma.done [#allocation6], 128
    $region29: #{tpu_custom_call.1} parent=1 // pred_fallthru
      _
    // Predicated region
    $region30: #{tpu_custom_call.1} parent=1 // pred_check
      _
    $region31: #{tpu_custom_call.1} parent=1 // pred_check_branch
      %60 = sbr.rel (0) target = $region33
    $region32: #{tpu_custom_call.1} parent=1 // pred_region
      %61 = dma.done [#allocation6], 128
    $region33: #{tpu_custom_call.1} parent=1 // pred_fallthru
      _
    %v63 = vld [vmem:[#allocation2] sm:$0xf]
    %v64 = vld [vmem:[#allocation2 + $0x4] sm:$0xf]
    %v65 = vld [vmem:[#allocation7] sm:$0xf]
    %v66 = vld [vmem:[#allocation7 + $0x4] sm:$0xf]
    %v67 = vld [vmem:[#allocation5] sm:$0xf]
    %v68 = vld [vmem:[#allocation5 + $0x4] sm:$0xf]
    %v69 = vld [vmem:[%s3] sm:$0xf]
    %v70 = vld [vmem:[%s3 + $0x4] sm:$0xf]
    %v73 = vunpack.c.l.b16 %v67
    %v74 = vunpack.c.l.b16 %v68
    %v75 = vpack.c.b16 %v74, %v73
    %v78 = vunpack.c.l.b16 %v69
    %v79 = vunpack.c.l.b16 %v70
    %v80 = vpack.c.b16 %v79, %v78
    %vm82 = vcmask 130048
    %v84 = vsel %vm82, %v75, 0
    %86 = vmatprep.subr.bf16.mxu0 0
    %87 = vmatpush1.bf16.msra.mxu0 %v80
    %88 = vmatprep.subr.bf16.mxu0 0
    %89 = vmatpush1.bf16.msra.mxu0 0
    %90 = vmatprep.subr.bf16.mxu0 0
    %91 = vmatpush1.bf16.msra.mxu0 0
    %92 = vmatprep.subr.bf16.mxu0 0
    %93 = vmatpush1.bf16.msra.mxu0 0
    %94 = vmatprep.subr.bf16.mxu0 0
    %95 = vmatpush1.bf16.msra.mxu0 0
    %96 = vmatprep.subr.bf16.mxu0 0
    %97 = vmatpush1.bf16.msra.mxu0 0
    %98 = vmatprep.subr.bf16.mxu0 0
    %99 = vmatpush1.bf16.msra.mxu0 0
    %100 = vmatprep.subr.bf16.mxu0 0
    %101 = vmatpush1.bf16.msra.mxu0 0
    %102 = vmatprep.subr.bf16.mxu0 0
    %103 = vmatpush1.bf16.msra.mxu0 0
    %104 = vmatprep.subr.bf16.mxu0 0
    %105 = vmatpush1.bf16.msra.mxu0 0
    %106 = vmatprep.subr.bf16.mxu0 0
    %107 = vmatpush1.bf16.msra.mxu0 0
    %108 = vmatprep.subr.bf16.mxu0 0
    %109 = vmatpush1.bf16.msra.mxu0 0
    %110 = vmatprep.subr.bf16.mxu0 0
    %111 = vmatpush1.bf16.msra.mxu0 0
    %112 = vmatprep.subr.bf16.mxu0 0
    %113 = vmatpush1.bf16.msra.mxu0 0
    %114 = vmatprep.subr.bf16.mxu0 0
    %115 = vmatpush1.bf16.msra.mxu0 0
    %116 = vmatprep.subr.bf16.mxu0 0
    %117 = vmatpush1.bf16.msra.mxu0 0
    %118 = vmatprep.mubr.bf16.mxu0 0
    %119 = vmatmul.mubr.bf16.gmra.mrb[0].mxu0 %v84
    %v120 = vpop.f32.mrb[0].mxu0
    %v121 = vadd.f32 0.0, %v120
    %v122 = vpop.f32.mrb[0].mxu0
    %v123 = vpop.f32.mrb[0].mxu0
    %v124 = vadd.f32 0.0, %v123
    %v125 = vpop.f32.mrb[0].mxu0
    %126 = vdwg.mxu0
    %v129 = vunpack.c.l.b16 %v63
    %v130 = vunpack.c.l.b16 %v64
    %v131 = vpack.c.b16 %v130, %v129
    %v134 = vunpack.c.l.b16 %v65
    %v135 = vunpack.c.l.b16 %v66
    %v136 = vpack.c.b16 %v135, %v134
    %v139 = vsel %vm82, %v131, 0
    %141 = vmatprep.subr.bf16.mxu0 0
    %142 = vmatpush1.bf16.msra.mxu0 %v136
    %143 = vmatprep.subr.bf16.mxu0 0
    %144 = vmatpush1.bf16.msra.mxu0 0
    %145 = vmatprep.subr.bf16.mxu0 0
    %146 = vmatpush1.bf16.msra.mxu0 0
    %147 = vmatprep.subr.bf16.mxu0 0
    %148 = vmatpush1.bf16.msra.mxu0 0
    %149 = vmatprep.subr.bf16.mxu0 0
    %150 = vmatpush1.bf16.msra.mxu0 0
    %151 = vmatprep.subr.bf16.mxu0 0
    %152 = vmatpush1.bf16.msra.mxu0 0
    %153 = vmatprep.subr.bf16.mxu0 0
    %154 = vmatpush1.bf16.msra.mxu0 0
    %155 = vmatprep.subr.bf16.mxu0 0
    %156 = vmatpush1.bf16.msra.mxu0 0
    %157 = vmatprep.subr.bf16.mxu0 0
    %158 = vmatpush1.bf16.msra.mxu0 0
    %159 = vmatprep.subr.bf16.mxu0 0
    %160 = vmatpush1.bf16.msra.mxu0 0
    %161 = vmatprep.subr.bf16.mxu0 0
    %162 = vmatpush1.bf16.msra.mxu0 0
    %163 = vmatprep.subr.bf16.mxu0 0
    %164 = vmatpush1.bf16.msra.mxu0 0
    %165 = vmatprep.subr.bf16.mxu0 0
    %166 = vmatpush1.bf16.msra.mxu0 0
    %167 = vmatprep.subr.bf16.mxu0 0
    %168 = vmatpush1.bf16.msra.mxu0 0
    %169 = vmatprep.subr.bf16.mxu0 0
    %170 = vmatpush1.bf16.msra.mxu0 0
    %171 = vmatprep.subr.bf16.mxu0 0
    %172 = vmatpush1.bf16.msra.mxu0 0
    %173 = vmatprep.mubr.bf16.mxu0 0
    %174 = vmatmul.mubr.bf16.gmra.mrb[0].mxu0 %v139
    %v175 = vpop.f32.mrb[0].mxu0
    %v176 = vadd.f32 %v121, %v175
    %v177 = vpop.f32.mrb[0].mxu0
    %v178 = vpop.f32.mrb[0].mxu0
    %v179 = vadd.f32 %v124, %v178
    %v180 = vpop.f32.mrb[0].mxu0
    %181 = vdwg.mxu0
    %v182 = vld [vmem:[%s4] sm:$0x1]
    %v184 = vlaneseq
    %v185 = vshrl.u32 %v184, 7
    %v186 = vsub.s32 0, %v185
    %v187 = vrot.slane %v182, %v186
    %v189 = vadd.f32 %v176, %v187
    %v190 = vadd.f32 %v179, %v187
    %vm191 = vcmp.ge.f32.partialorder %v189, 0.0
    %vm192 = vcmp.ge.f32.partialorder %v190, 0.0
    %v193 = vmul.f32 %v189, 0.2
    %v194 = vmul.f32 %v190, 0.2
    %v195 = vsel %vm191, %v189, %v193
    %v196 = vsel %vm192, %v190, %v194
    %v197 = vpack.c.bf16 %v195, %v195
    %v198 = vpack.c.bf16 %v196, %v196
    %vm199 = vcmask 125952
    %200 = vst.msk [vmem:[#allocation8] sm:$0xf] %vm199, %v197
    %201 = vst.msk [vmem:[#allocation8 + $0x4] sm:$0xf] %vm199, %v198
    // Predicated region
    $region34: #{tpu_custom_call.1} parent=1 // pred_check
      _
    $region35: #{tpu_custom_call.1} parent=1 // pred_check_branch
      %203 = sbr.rel (0) target = $region37
    $region36: #{tpu_custom_call.1} parent=1 // pred_region
      %s205 = ssub.s32 128, 128
      %206 = vsyncadd [#allocation4], %s205
      %s207 = sshll.u32 [#allocation8], 4
      %s208 = int_to_ptr.vmem [resolvable:$true] %s207
      %213 = dma.vmem_to_hbm [thread:$0]  %s208, 128, %s5, [#allocation4], 64, 64, 4
    $region37: #{tpu_custom_call.1} parent=1 // pred_fallthru
      _
    // Predicated region
    $region38: #{tpu_custom_call.1} parent=1 // pred_check
      _
    $region39: #{tpu_custom_call.1} parent=1 // pred_check_branch
      %215 = sbr.rel (0) target = $region41
    $region40: #{tpu_custom_call.1} parent=1 // pred_region
      %216 = dma.done [#allocation4], 128
    $region41: #{tpu_custom_call.1} parent=1 // pred_fallthru
      _
    %217 = vsyncpa [#allocation3], 1
    %218 = vsyncpa [#allocation6], 1
    %219 = vsyncpa [#allocation4], 1

</llo_original>
